<compile_context>
chip_gen: v5e
topology: v5e:2x2
jax: 0.10.0
libtpu: 0.0.40
codegen_flags: <defaults>
</compile_context>

<pallas_src>
import functools

import jax
import jax.numpy as jnp
from jax import lax
from jax.experimental import pallas as pl
from jax.experimental.pallas import tpu as pltpu

LANE = 128


def _frame_continuity_kernel(pred_ref, tgt_ref, out_ref, *, W, C, TB, CH):
    # pred_ref: (W, TB) int32   predicted class per frame (batch on lane axis)
    # tgt_ref : (W, TB) int32   target class per frame
    # out_ref : (1, 1, TB) f32  per-batch sum_c (max_run_pred_c - max_run_true_c)^2
    two_c = 2 * C
    nchunks = TB // CH

    # Constant sublane metadata: rows 0..C-1 track predicted-class runs,
    # rows C..2C-1 track target-class runs (one full sublane group for C == 4).
    row = lax.broadcasted_iota(jnp.int32, (two_c, CH), 0)
    is_pred = row < C
    cls = jnp.where(is_pred, row, row - C)

    def scan_step(t, off, carry):
        run, best = carry
        p_slab = pred_ref[pl.ds(t, 1), pl.ds(off, CH)]            # (1, CH)
        t_slab = tgt_ref[pl.ds(t, 1), pl.ds(off, CH)]             # (1, CH)
        p_b = jnp.broadcast_to(p_slab, (two_c, CH))
        t_b = jnp.broadcast_to(t_slab, (two_c, CH))
        val = jnp.where(is_pred, p_b, t_b)                        # (2C, CH)
        hit = val == cls                                          # fused one-hot
        run = jnp.where(hit, run + 1.0, 0.0)                      # consecutive run
        best = jnp.maximum(best, run)                             # max run so far
        return run, best

    # Static loop over lane chunks: scan state is 2 x (2C, CH) f32 = a handful
    # of vregs per chunk (no spills) even though the grid block TB is large.
    for j in range(nchunks):
        off = j * CH
        carry = (jnp.zeros((two_c, CH), jnp.float32),
                 jnp.zeros((two_c, CH), jnp.float32))
        if W <= 32:
            for t in range(W):                                    # small W: unroll
                carry = scan_step(t, off, carry)
        else:
            carry = lax.fori_loop(0, W,
                                  lambda t, c: scan_step(t, off, c), carry)
        _, best = carry
        diff = best[:C] - best[C:two_c]                           # (C, CH)
        per_batch = jnp.sum(diff * diff, axis=0, keepdims=True)   # (1, CH)
        out_ref[:, :, pl.ds(off, CH)] = per_batch[None]           # (1, 1, CH)


def frame_continuity_loss(predictions, targets):
    """Pallas TPU implementation of FrameContinuityLoss.forward."""
    B, W, C = predictions.shape
    assert targets.shape == (B, W), "targets must be (batch, window)"

    # argmax stays in XLA (fused with the read of `predictions`); the kernel only
    # ever sees two small int32 class maps.
    pred_classes = jnp.argmax(predictions, axis=-1).astype(jnp.int32)   # (B, W)
    tgts = targets.astype(jnp.int32)                                    # (B, W)

    # ---- lane-dense tiling: window on sublanes, padded batch on 128 lanes ----
    lanes_needed = pl.cdiv(B, LANE) * LANE
    CH = min(1024, lanes_needed)              # inner chunk: scan state fits vregs
    block_budget = 2 * 1024 * 1024            # per-input block bytes (gen-safe)
    nchunks = max(1, min(8,
                         block_budget // (W * CH * 4),
                         pl.cdiv(lanes_needed, CH)))
    TB = CH * nchunks
    B_pad = pl.cdiv(B, TB) * TB
    num_tiles = B_pad // TB

    pred_t = jnp.transpose(pred_classes, (1, 0))                  # (W, B)
    tgt_t = jnp.transpose(tgts, (1, 0))                           # (W, B)
    if B_pad != B:
        # Padded lanes: class-0 run of length W on both pred & true -> 0 loss.
        pred_t = jnp.pad(pred_t, ((0, 0), (0, B_pad - B)))
        tgt_t = jnp.pad(tgt_t, ((0, 0), (0, B_pad - B)))

    kernel = functools.partial(_frame_continuity_kernel, W=W, C=C, TB=TB, CH=CH)
    partial_sums = pl.pallas_call(
        kernel,
        out_shape=jax.ShapeDtypeStruct((num_tiles, 1, TB), jnp.float32),
        grid=(num_tiles,),
        in_specs=[
            pl.BlockSpec((W, TB), lambda i: (0, i)),
            pl.BlockSpec((W, TB), lambda i: (0, i)),
        ],
        out_specs=pl.BlockSpec((1, 1, TB), lambda i: (i, 0, 0)),
        compiler_params=pltpu.CompilerParams(
            dimension_semantics=("parallel",)),
    )(pred_t, tgt_t)

    # Tiny final reduction + MSE normalization over the real (B, C) entries.
    return jnp.sum(partial_sums) / (B * C)


# ----------------------- pure-JAX reference (for checking) -----------------------
def frame_continuity_loss_ref(predictions, targets):
    B, W, C = predictions.shape
    pred_classes = jnp.argmax(predictions, axis=-1)               # (B, W)
    classes = jnp.arange(C).reshape(1, C, 1)
    pred_masks = (pred_classes[:, None, :] == classes).astype(jnp.float32)
    true_masks = (targets[:, None, :] == classes).astype(jnp.float32)

    def max_run(m):  # (B, C, W)
        run = jnp.zeros(m.shape[:-1], jnp.float32)
        best = jnp.zeros(m.shape[:-1], jnp.float32)
        for t in range(W):
            run = (run + 1.0) * m[..., t]
            best = jnp.maximum(best, run)
        return best

    p = max_run(pred_masks)
    t = max_run(true_masks)
    return jnp.mean((p - t) ** 2)


if __name__ == "__main__":
    key = jax.random.PRNGKey(0)
    k1, k2, k3, k4, k5, k6 = jax.random.split(key, 6)

    # (batch, window, classes)
    B, W, C = 2, 8, 4
    preds = jax.random.normal(k1, (B, W, C), dtype=jnp.float32)
    tgts = jax.random.randint(k2, (B, W), 0, C, dtype=jnp.int32)
    loss = frame_continuity_loss(preds, tgts)
    jax.block_until_ready(loss)
    ref = frame_continuity_loss_ref(preds, tgts)
    assert jnp.allclose(loss, ref, atol=1e-5), (loss, ref)

    # Literal example from the PyTorch file (B=1, W=5, C=3) -> loss == 0
    preds2 = jnp.array(
        [[[0.1, 0.7, 0.2],
          [0.9, 0.1, 0.1],
          [0.7, 0.2, 0.1],
          [0.6, 0.3, 0.1],
          [0.1, 0.9, 0.0]]], dtype=jnp.float32)
    tgts2 = jnp.array([[1, 0, 0, 0, 1]], dtype=jnp.int32)
    loss2 = frame_continuity_loss(preds2, tgts2)
    jax.block_until_ready(loss2)
    assert jnp.allclose(loss2, frame_continuity_loss_ref(preds2, tgts2), atol=1e-5)
    assert jnp.allclose(loss2, 0.0, atol=1e-6)

    # Non-multiple-of-128 batch to exercise the lane padding path.
    B3, W3, C3 = 200, 8, 4
    preds3 = jax.random.normal(k3, (B3, W3, C3), dtype=jnp.float32)
    tgts3 = jax.random.randint(k4, (B3, W3), 0, C3, dtype=jnp.int32)
    loss3 = frame_continuity_loss(preds3, tgts3)
    jax.block_until_ready(loss3)
    ref3 = frame_continuity_loss_ref(preds3, tgts3)
    assert jnp.allclose(loss3, ref3, atol=1e-5), (loss3, ref3)

    # Larger batch: exercises the multi-chunk (nchunks > 1) in-kernel loop.
    B4, W4, C4 = 1500, 8, 4
    preds4 = jax.random.normal(k5, (B4, W4, C4), dtype=jnp.bfloat16)
    tgts4 = jax.random.randint(k6, (B4, W4), 0, C4, dtype=jnp.int32)
    loss4 = frame_continuity_loss(preds4, tgts4)
    jax.block_until_ready(loss4)
    ref4 = frame_continuity_loss_ref(preds4.astype(jnp.float32), tgts4)
    assert jnp.allclose(loss4, ref4, atol=1e-4), (loss4, ref4)

    # Long window: exercises the lax.fori_loop scan path (W > 32).
    preds5 = jax.random.normal(k1, (4, 40, 3), dtype=jnp.float32)
    tgts5 = jax.random.randint(k2, (4, 40), 0, 3, dtype=jnp.int32)
    loss5 = frame_continuity_loss(preds5, tgts5)
    jax.block_until_ready(loss5)
    ref5 = frame_continuity_loss_ref(preds5, tgts5)
    assert jnp.allclose(loss5, ref5, atol=1e-5), (loss5, ref5)

    print("KERNEL_OK")
</pallas_src>

<mosaic_0001>
module attributes {stable_mosaic.version = 11 : i64} {
  func.func @_frame_continuity_kernel(%arg0: i32, %arg1: memref<8x128xi32, #tpu.memory_space<vmem>>, %arg2: memref<8x128xi32, #tpu.memory_space<vmem>>, %arg3: memref<1x1x128xf32, #tpu.memory_space<vmem>>) attributes {dimension_semantics = [#tpu.dimension_semantics<parallel>], iteration_bounds = array<i64: 1>, scalar_prefetch = 0 : i64, scratch_operands = 0 : i64, tpu.core_type = #tpu.core_type<tc>, window_params = [{transform_indices = @transform_0, window_bounds = array<i64: 8, 128>}, {transform_indices = @transform_1, window_bounds = array<i64: 8, 128>}, {transform_indices = @transform_2, window_bounds = array<i64: 1, 1, 128>}]} {
    %0 = tpu.iota {dimensions = array<i32: 0>} : vector<8x128xi32>
    %c4_i32 = arith.constant 4 : i32
    %1 = vector.broadcast %c4_i32 : i32 to vector<8x128xi32>
    %2 = arith.cmpi slt, %0, %1 : vector<8x128xi32>
    %c4_i32_0 = arith.constant 4 : i32
    %3 = vector.broadcast %c4_i32_0 : i32 to vector<8x128xi32>
    %4 = arith.subi %0, %3 : vector<8x128xi32>
    %5 = arith.select %2, %0, %4 : vector<8x128xi1>, vector<8x128xi32>
    %cst = arith.constant 0.000000e+00 : f32
    %6 = vector.broadcast %cst : f32 to vector<8x128xf32>
    %cst_1 = arith.constant 0.000000e+00 : f32
    %7 = vector.broadcast %cst_1 : f32 to vector<8x128xf32>
    %c0 = arith.constant 0 : index
    %c0_2 = arith.constant 0 : index
    %8 = vector.load %arg1[%c0, %c0_2] : memref<8x128xi32, #tpu.memory_space<vmem>>, vector<1x128xi32>
    %c0_3 = arith.constant 0 : index
    %c0_4 = arith.constant 0 : index
    %9 = vector.load %arg2[%c0_3, %c0_4] : memref<8x128xi32, #tpu.memory_space<vmem>>, vector<1x128xi32>
    %10 = vector.shape_cast %8 : vector<1x128xi32> to vector<1x128xi32>
    %11 = vector.broadcast %10 : vector<1x128xi32> to vector<8x128xi32>
    %12 = vector.shape_cast %9 : vector<1x128xi32> to vector<1x128xi32>
    %13 = vector.broadcast %12 : vector<1x128xi32> to vector<8x128xi32>
    %14 = arith.select %2, %11, %13 : vector<8x128xi1>, vector<8x128xi32>
    %15 = arith.cmpi eq, %14, %5 : vector<8x128xi32>
    %cst_5 = arith.constant 1.000000e+00 : f32
    %16 = vector.broadcast %cst_5 : f32 to vector<8x128xf32>
    %17 = arith.addf %6, %16 : vector<8x128xf32>
    %cst_6 = arith.constant 0.000000e+00 : f32
    %18 = vector.broadcast %cst_6 : f32 to vector<8x128xf32>
    %19 = arith.select %15, %17, %18 : vector<8x128xi1>, vector<8x128xf32>
    %20 = arith.maximumf %7, %19 : vector<8x128xf32>
    %c1 = arith.constant 1 : index
    %c0_7 = arith.constant 0 : index
    %21 = vector.load %arg1[%c1, %c0_7] : memref<8x128xi32, #tpu.memory_space<vmem>>, vector<1x128xi32>
    %c1_8 = arith.constant 1 : index
    %c0_9 = arith.constant 0 : index
    %22 = vector.load %arg2[%c1_8, %c0_9] : memref<8x128xi32, #tpu.memory_space<vmem>>, vector<1x128xi32>
    %23 = vector.shape_cast %21 : vector<1x128xi32> to vector<1x128xi32>
    %24 = vector.broadcast %23 : vector<1x128xi32> to vector<8x128xi32>
    %25 = vector.shape_cast %22 : vector<1x128xi32> to vector<1x128xi32>
    %26 = vector.broadcast %25 : vector<1x128xi32> to vector<8x128xi32>
    %27 = arith.select %2, %24, %26 : vector<8x128xi1>, vector<8x128xi32>
    %28 = arith.cmpi eq, %27, %5 : vector<8x128xi32>
    %cst_10 = arith.constant 1.000000e+00 : f32
    %29 = vector.broadcast %cst_10 : f32 to vector<8x128xf32>
    %30 = arith.addf %19, %29 : vector<8x128xf32>
    %cst_11 = arith.constant 0.000000e+00 : f32
    %31 = vector.broadcast %cst_11 : f32 to vector<8x128xf32>
    %32 = arith.select %28, %30, %31 : vector<8x128xi1>, vector<8x128xf32>
    %33 = arith.maximumf %20, %32 : vector<8x128xf32>
    %c2 = arith.constant 2 : index
    %c0_12 = arith.constant 0 : index
    %34 = vector.load %arg1[%c2, %c0_12] : memref<8x128xi32, #tpu.memory_space<vmem>>, vector<1x128xi32>
    %c2_13 = arith.constant 2 : index
    %c0_14 = arith.constant 0 : index
    %35 = vector.load %arg2[%c2_13, %c0_14] : memref<8x128xi32, #tpu.memory_space<vmem>>, vector<1x128xi32>
    %36 = vector.shape_cast %34 : vector<1x128xi32> to vector<1x128xi32>
    %37 = vector.broadcast %36 : vector<1x128xi32> to vector<8x128xi32>
    %38 = vector.shape_cast %35 : vector<1x128xi32> to vector<1x128xi32>
    %39 = vector.broadcast %38 : vector<1x128xi32> to vector<8x128xi32>
    %40 = arith.select %2, %37, %39 : vector<8x128xi1>, vector<8x128xi32>
    %41 = arith.cmpi eq, %40, %5 : vector<8x128xi32>
    %cst_15 = arith.constant 1.000000e+00 : f32
    %42 = vector.broadcast %cst_15 : f32 to vector<8x128xf32>
    %43 = arith.addf %32, %42 : vector<8x128xf32>
    %cst_16 = arith.constant 0.000000e+00 : f32
    %44 = vector.broadcast %cst_16 : f32 to vector<8x128xf32>
    %45 = arith.select %41, %43, %44 : vector<8x128xi1>, vector<8x128xf32>
    %46 = arith.maximumf %33, %45 : vector<8x128xf32>
    %c3 = arith.constant 3 : index
    %c0_17 = arith.constant 0 : index
    %47 = vector.load %arg1[%c3, %c0_17] : memref<8x128xi32, #tpu.memory_space<vmem>>, vector<1x128xi32>
    %c3_18 = arith.constant 3 : index
    %c0_19 = arith.constant 0 : index
    %48 = vector.load %arg2[%c3_18, %c0_19] : memref<8x128xi32, #tpu.memory_space<vmem>>, vector<1x128xi32>
    %49 = vector.shape_cast %47 : vector<1x128xi32> to vector<1x128xi32>
    %50 = vector.broadcast %49 : vector<1x128xi32> to vector<8x128xi32>
    %51 = vector.shape_cast %48 : vector<1x128xi32> to vector<1x128xi32>
    %52 = vector.broadcast %51 : vector<1x128xi32> to vector<8x128xi32>
    %53 = arith.select %2, %50, %52 : vector<8x128xi1>, vector<8x128xi32>
    %54 = arith.cmpi eq, %53, %5 : vector<8x128xi32>
    %cst_20 = arith.constant 1.000000e+00 : f32
    %55 = vector.broadcast %cst_20 : f32 to vector<8x128xf32>
    %56 = arith.addf %45, %55 : vector<8x128xf32>
    %cst_21 = arith.constant 0.000000e+00 : f32
    %57 = vector.broadcast %cst_21 : f32 to vector<8x128xf32>
    %58 = arith.select %54, %56, %57 : vector<8x128xi1>, vector<8x128xf32>
    %59 = arith.maximumf %46, %58 : vector<8x128xf32>
    %c4 = arith.constant 4 : index
    %c0_22 = arith.constant 0 : index
    %60 = vector.load %arg1[%c4, %c0_22] : memref<8x128xi32, #tpu.memory_space<vmem>>, vector<1x128xi32>
    %c4_23 = arith.constant 4 : index
    %c0_24 = arith.constant 0 : index
    %61 = vector.load %arg2[%c4_23, %c0_24] : memref<8x128xi32, #tpu.memory_space<vmem>>, vector<1x128xi32>
    %62 = vector.shape_cast %60 : vector<1x128xi32> to vector<1x128xi32>
    %63 = vector.broadcast %62 : vector<1x128xi32> to vector<8x128xi32>
    %64 = vector.shape_cast %61 : vector<1x128xi32> to vector<1x128xi32>
    %65 = vector.broadcast %64 : vector<1x128xi32> to vector<8x128xi32>
    %66 = arith.select %2, %63, %65 : vector<8x128xi1>, vector<8x128xi32>
    %67 = arith.cmpi eq, %66, %5 : vector<8x128xi32>
    %cst_25 = arith.constant 1.000000e+00 : f32
    %68 = vector.broadcast %cst_25 : f32 to vector<8x128xf32>
    %69 = arith.addf %58, %68 : vector<8x128xf32>
    %cst_26 = arith.constant 0.000000e+00 : f32
    %70 = vector.broadcast %cst_26 : f32 to vector<8x128xf32>
    %71 = arith.select %67, %69, %70 : vector<8x128xi1>, vector<8x128xf32>
    %72 = arith.maximumf %59, %71 : vector<8x128xf32>
    %c5 = arith.constant 5 : index
    %c0_27 = arith.constant 0 : index
    %73 = vector.load %arg1[%c5, %c0_27] : memref<8x128xi32, #tpu.memory_space<vmem>>, vector<1x128xi32>
    %c5_28 = arith.constant 5 : index
    %c0_29 = arith.constant 0 : index
    %74 = vector.load %arg2[%c5_28, %c0_29] : memref<8x128xi32, #tpu.memory_space<vmem>>, vector<1x128xi32>
    %75 = vector.shape_cast %73 : vector<1x128xi32> to vector<1x128xi32>
    %76 = vector.broadcast %75 : vector<1x128xi32> to vector<8x128xi32>
    %77 = vector.shape_cast %74 : vector<1x128xi32> to vector<1x128xi32>
    %78 = vector.broadcast %77 : vector<1x128xi32> to vector<8x128xi32>
    %79 = arith.select %2, %76, %78 : vector<8x128xi1>, vector<8x128xi32>
    %80 = arith.cmpi eq, %79, %5 : vector<8x128xi32>
    %cst_30 = arith.constant 1.000000e+00 : f32
    %81 = vector.broadcast %cst_30 : f32 to vector<8x128xf32>
    %82 = arith.addf %71, %81 : vector<8x128xf32>
    %cst_31 = arith.constant 0.000000e+00 : f32
    %83 = vector.broadcast %cst_31 : f32 to vector<8x128xf32>
    %84 = arith.select %80, %82, %83 : vector<8x128xi1>, vector<8x128xf32>
    %85 = arith.maximumf %72, %84 : vector<8x128xf32>
    %c6 = arith.constant 6 : index
    %c0_32 = arith.constant 0 : index
    %86 = vector.load %arg1[%c6, %c0_32] : memref<8x128xi32, #tpu.memory_space<vmem>>, vector<1x128xi32>
    %c6_33 = arith.constant 6 : index
    %c0_34 = arith.constant 0 : index
    %87 = vector.load %arg2[%c6_33, %c0_34] : memref<8x128xi32, #tpu.memory_space<vmem>>, vector<1x128xi32>
    %88 = vector.shape_cast %86 : vector<1x128xi32> to vector<1x128xi32>
    %89 = vector.broadcast %88 : vector<1x128xi32> to vector<8x128xi32>
    %90 = vector.shape_cast %87 : vector<1x128xi32> to vector<1x128xi32>
    %91 = vector.broadcast %90 : vector<1x128xi32> to vector<8x128xi32>
    %92 = arith.select %2, %89, %91 : vector<8x128xi1>, vector<8x128xi32>
    %93 = arith.cmpi eq, %92, %5 : vector<8x128xi32>
    %cst_35 = arith.constant 1.000000e+00 : f32
    %94 = vector.broadcast %cst_35 : f32 to vector<8x128xf32>
    %95 = arith.addf %84, %94 : vector<8x128xf32>
    %cst_36 = arith.constant 0.000000e+00 : f32
    %96 = vector.broadcast %cst_36 : f32 to vector<8x128xf32>
    %97 = arith.select %93, %95, %96 : vector<8x128xi1>, vector<8x128xf32>
    %98 = arith.maximumf %85, %97 : vector<8x128xf32>
    %c7 = arith.constant 7 : index
    %c0_37 = arith.constant 0 : index
    %99 = vector.load %arg1[%c7, %c0_37] : memref<8x128xi32, #tpu.memory_space<vmem>>, vector<1x128xi32>
    %c7_38 = arith.constant 7 : index
    %c0_39 = arith.constant 0 : index
    %100 = vector.load %arg2[%c7_38, %c0_39] : memref<8x128xi32, #tpu.memory_space<vmem>>, vector<1x128xi32>
    %101 = vector.shape_cast %99 : vector<1x128xi32> to vector<1x128xi32>
    %102 = vector.broadcast %101 : vector<1x128xi32> to vector<8x128xi32>
    %103 = vector.shape_cast %100 : vector<1x128xi32> to vector<1x128xi32>
    %104 = vector.broadcast %103 : vector<1x128xi32> to vector<8x128xi32>
    %105 = arith.select %2, %102, %104 : vector<8x128xi1>, vector<8x128xi32>
    %106 = arith.cmpi eq, %105, %5 : vector<8x128xi32>
    %cst_40 = arith.constant 1.000000e+00 : f32
    %107 = vector.broadcast %cst_40 : f32 to vector<8x128xf32>
    %108 = arith.addf %97, %107 : vector<8x128xf32>
    %cst_41 = arith.constant 0.000000e+00 : f32
    %109 = vector.broadcast %cst_41 : f32 to vector<8x128xf32>
    %110 = arith.select %106, %108, %109 : vector<8x128xi1>, vector<8x128xf32>
    %111 = arith.maximumf %98, %110 : vector<8x128xf32>
    %112 = vector.extract_strided_slice %111 {offsets = [0, 0], sizes = [4, 128], strides = [1, 1]} : vector<8x128xf32> to vector<4x128xf32>
    %113 = vector.extract_strided_slice %111 {offsets = [4, 0], sizes = [4, 128], strides = [1, 1]} : vector<8x128xf32> to vector<4x128xf32>
    %114 = arith.subf %112, %113 : vector<4x128xf32>
    %115 = arith.mulf %114, %114 : vector<4x128xf32>
    %cst_42 = arith.constant dense<0.000000e+00> : vector<128xf32>
    %116 = vector.multi_reduction <add>, %115, %cst_42 [0] : vector<4x128xf32> to vector<128xf32>
    %117 = vector.shape_cast %116 : vector<128xf32> to vector<1x128xf32>
    %118 = vector.shape_cast %117 : vector<1x128xf32> to vector<1x1x128xf32>
    %c0_43 = arith.constant 0 : index
    %c0_44 = arith.constant 0 : index
    %c0_45 = arith.constant 0 : index
    %119 = vector.load %arg3[%c0_43, %c0_44, %c0_45] : memref<1x1x128xf32, #tpu.memory_space<vmem>>, vector<1x1x128xf32>
    tpu.vector_store %arg3[%c0_43, %c0_44, %c0_45], %118 {strides = array<i32>} : memref<1x1x128xf32, #tpu.memory_space<vmem>>, vector<1x1x128xf32>,
    return
  }
  func.func @transform_0(%arg0: i32) -> (i32, i32) {
    %c0_i32 = arith.constant 0 : i32
    %c0_i32_0 = arith.constant 0 : i32
    return %c0_i32, %arg0 : i32, i32
  }
  func.func @transform_1(%arg0: i32) -> (i32, i32) {
    %c0_i32 = arith.constant 0 : i32
    %c0_i32_0 = arith.constant 0 : i32
    return %c0_i32, %arg0 : i32, i32
  }
  func.func @transform_2(%arg0: i32) -> (i32, i32, i32) {
    %c0_i32 = arith.constant 0 : i32
    %c0_i32_0 = arith.constant 0 : i32
    %c0_i32_1 = arith.constant 0 : i32
    return %arg0, %c0_i32, %c0_i32_0 : i32, i32, i32
  }
}

</mosaic_0001>

<llo_original>
// kernel: tpu_custom_call.1
$region0: #{tpu_custom_call.1}
  #allocation0 [shape = 'u32[]', space=smem, size = 0x4, offset = 0x4, fixed_abs, tag = 'smem constant byte address 0x4 - core index']
  #allocation1 [shape = 'u32[72,128]{1,0:T(1,128)}', space=vmem, size = 0x9000, scoped, tag = 'internal scratch']
  %s0 = inlined_call_operand.hbm [shape: s32[8,128], index: 0, kind: input, shape index: {}]
  %s1 = inlined_call_operand.hbm [shape: s32[8,128], index: 1, kind: input, shape index: {}]
  %s2 = inlined_call_operand.hbm [shape: f32[1,1,128], index: 2, kind: output, shape index: {}]
  %s3 = sld [smem:[#allocation0]]
  $region26: #{tpu_custom_call.1} parent=0
    _
  %s5 = ssub.s32 1, %s3
  %s6 = scalar_select 0, %s5, %s3
  $region1: #{tpu_custom_call.1} parent=0
    #allocation2 [shape = 'u8[4096]{0}', space=vmem, size = 0x1000, scoped, tag = 'input window, operand 0, single buffered']
    #allocation3 [shape = 's32[1]{0}', space=sflag, size = 0x4, scoped, tag = 'scoped memory for tpu_custom_call.1']
    #allocation4 [shape = 's32[1]{0}', space=sflag, size = 0x4, scoped, tag = 'scoped memory for tpu_custom_call.1']
    #allocation5 [shape = 'u8[4096]{0}', space=vmem, size = 0x1000, scoped, tag = 'input window, operand 1, single buffered']
    #allocation6 [shape = 's32[1]{0}', space=sflag, size = 0x4, scoped, tag = 'scoped memory for tpu_custom_call.1']
    #allocation7 [shape = 'u8[512]{0}', space=vmem, size = 0x400, scoped, tag = 'output window, operand 0, single buffered']
    %7 = vsyncpa [#allocation3], 0
    %8 = vsyncpa [#allocation6], 0
    %9 = vsyncpa [#allocation4], 0
    // Predicated region
    $region2: #{tpu_custom_call.1} parent=1 // pred_check
      _
    $region3: #{tpu_custom_call.1} parent=1 // pred_check_branch
      %11 = sbr.rel (0) target = $region5
    $region4: #{tpu_custom_call.1} parent=1 // pred_region
      %13 = vsyncadd [#allocation3], 0
      %s15 = sshll.u32 %s0, 4
      %s16 = int_to_ptr.hbm [resolvable:$true] %s15
      %s17 = sshll.u32 [#allocation2], 4
      %s18 = int_to_ptr.vmem [resolvable:$true] %s17
      %20 = dma.hbm_to_vmem [thread:$0]  %s16, 128, %s18, [#allocation3]
    $region5: #{tpu_custom_call.1} parent=1 // pred_fallthru
      _
    // Predicated region
    $region6: #{tpu_custom_call.1} parent=1 // pred_check
      _
    $region7: #{tpu_custom_call.1} parent=1 // pred_check_branch
      %22 = sbr.rel (0) target = $region9
    $region8: #{tpu_custom_call.1} parent=1 // pred_region
      %24 = vsyncadd [#allocation6], 0
      %s26 = sshll.u32 %s1, 4
      %s27 = int_to_ptr.hbm [resolvable:$true] %s26
      %s28 = sshll.u32 [#allocation5], 4
      %s29 = int_to_ptr.vmem [resolvable:$true] %s28
      %31 = dma.hbm_to_vmem [thread:$0]  %s27, 128, %s29, [#allocation6]
    $region9: #{tpu_custom_call.1} parent=1 // pred_fallthru
      _
    // Predicated region
    $region10: #{tpu_custom_call.1} parent=1 // pred_check
      _
    $region11: #{tpu_custom_call.1} parent=1 // pred_check_branch
      %33 = sbr.rel (0) target = $region13
    $region12: #{tpu_custom_call.1} parent=1 // pred_region
      %35 = dma.done [#allocation3], 128
    $region13: #{tpu_custom_call.1} parent=1 // pred_fallthru
      _
    // Predicated region
    $region14: #{tpu_custom_call.1} parent=1 // pred_check
      _
    $region15: #{tpu_custom_call.1} parent=1 // pred_check_branch
      %37 = sbr.rel (0) target = $region17
    $region16: #{tpu_custom_call.1} parent=1 // pred_region
      %39 = dma.done [#allocation6], 128
    $region17: #{tpu_custom_call.1} parent=1 // pred_fallthru
      _
    %v40 = vlaneseq
    %v41 = vshrl.u32 %v40, 7
    %vm42 = vcmp.lt.s32.totalorder %v41, 4
    %v43 = vsub.s32 %v41, 4
    %v44 = vsel %vm42, %v41, %v43
    %v45 = vld [vmem:[#allocation2] sm:$0x1]
    %v46 = vld [vmem:[#allocation5] sm:$0x1]
    %v47 = vperm.slane %v45, 0
    %v48 = vperm.slane %v46, 0
    %v49 = vsel %vm42, %v47, %v48
    %vm50 = vcmp.eq.s32.totalorder %v49, %v44
    %v51 = vsel %vm50, 1.0, 0.0
    %v52 = vmax.f32 %v51, 0.0
    %v53 = vld [vmem:[#allocation2 + $0x1] sm:$0x1]
    %v54 = vld [vmem:[#allocation5 + $0x1] sm:$0x1]
    %v55 = vperm.slane %v53, 0
    %v56 = vperm.slane %v54, 0
    %v57 = vsel %vm42, %v55, %v56
    %vm58 = vcmp.eq.s32.totalorder %v57, %v44
    %v59 = vadd.f32 %v51, 1.0
    %v60 = vsel %vm58, %v59, 0.0
    %v61 = vmax.f32 %v52, %v60
    %v62 = vld [vmem:[#allocation2 + $0x2] sm:$0x1]
    %v63 = vld [vmem:[#allocation5 + $0x2] sm:$0x1]
    %v64 = vperm.slane %v62, 0
    %v65 = vperm.slane %v63, 0
    %v66 = vsel %vm42, %v64, %v65
    %vm67 = vcmp.eq.s32.totalorder %v66, %v44
    %v68 = vadd.f32 %v60, 1.0
    %v69 = vsel %vm67, %v68, 0.0
    %v70 = vmax.f32 %v61, %v69
    %v71 = vld [vmem:[#allocation2 + $0x3] sm:$0x1]
    %v72 = vld [vmem:[#allocation5 + $0x3] sm:$0x1]
    %v73 = vperm.slane %v71, 0
    %v74 = vperm.slane %v72, 0
    %v75 = vsel %vm42, %v73, %v74
    %vm76 = vcmp.eq.s32.totalorder %v75, %v44
    %v77 = vadd.f32 %v69, 1.0
    %v78 = vsel %vm76, %v77, 0.0
    %v79 = vmax.f32 %v70, %v78
    %v80 = vld [vmem:[#allocation2 + $0x4] sm:$0x1]
    %v81 = vld [vmem:[#allocation5 + $0x4] sm:$0x1]
    %v82 = vperm.slane %v80, 0
    %v83 = vperm.slane %v81, 0
    %v84 = vsel %vm42, %v82, %v83
    %vm85 = vcmp.eq.s32.totalorder %v84, %v44
    %v86 = vadd.f32 %v78, 1.0
    %v87 = vsel %vm85, %v86, 0.0
    %v88 = vmax.f32 %v79, %v87
    %v89 = vld [vmem:[#allocation2 + $0x5] sm:$0x1]
    %v90 = vld [vmem:[#allocation5 + $0x5] sm:$0x1]
    %v91 = vperm.slane %v89, 0
    %v92 = vperm.slane %v90, 0
    %v93 = vsel %vm42, %v91, %v92
    %vm94 = vcmp.eq.s32.totalorder %v93, %v44
    %v95 = vadd.f32 %v87, 1.0
    %v96 = vsel %vm94, %v95, 0.0
    %v97 = vmax.f32 %v88, %v96
    %v98 = vld [vmem:[#allocation2 + $0x6] sm:$0x1]
    %v99 = vld [vmem:[#allocation5 + $0x6] sm:$0x1]
    %v100 = vperm.slane %v98, 0
    %v101 = vperm.slane %v99, 0
    %v102 = vsel %vm42, %v100, %v101
    %vm103 = vcmp.eq.s32.totalorder %v102, %v44
    %v104 = vadd.f32 %v96, 1.0
    %v105 = vsel %vm103, %v104, 0.0
    %v106 = vmax.f32 %v97, %v105
    %v107 = vld [vmem:[#allocation2 + $0x7] sm:$0x1]
    %v108 = vld [vmem:[#allocation5 + $0x7] sm:$0x1]
    %v109 = vperm.slane %v107, 0
    %v110 = vperm.slane %v108, 0
    %v111 = vsel %vm42, %v109, %v110
    %vm112 = vcmp.eq.s32.totalorder %v111, %v44
    %v113 = vadd.f32 %v105, 1.0
    %v114 = vsel %vm112, %v113, 0.0
    %v115 = vmax.f32 %v106, %v114
    %v117 = vrot.slane %v115, 4
    %v119 = vsub.f32 %v115, %v117
    %v120 = vmul.f32 %v119, %v119
    %vm121 = vcmask 1043456
    %v122 = vsel %vm121, %v120, 0.0
    %v123 = vrot.slane %v122, 4
    %v124 = vadd.f32 %v122, %v123
    %v125 = vrot.slane %v124, 2
    %v126 = vadd.f32 %v124, %v125
    %v127 = vrot.slane %v126, 1
    %v128 = vadd.f32 %v126, %v127
    %129 = vst [vmem:[#allocation7] sm:$0x1] %v128
    // Predicated region
    $region18: #{tpu_custom_call.1} parent=1 // pred_check
      _
    $region19: #{tpu_custom_call.1} parent=1 // pred_check_branch
      %131 = sbr.rel (0) target = $region21
    $region20: #{tpu_custom_call.1} parent=1 // pred_region
      %133 = vsyncadd [#allocation4], 0
      %s135 = sshll.u32 [#allocation7], 4
      %s136 = int_to_ptr.vmem [resolvable:$true] %s135
      %s137 = sshll.u32 %s2, 4
      %s138 = int_to_ptr.hbm [resolvable:$true] %s137
      %140 = dma.vmem_to_hbm [thread:$0]  %s136, 16, %s138, [#allocation4]
    $region21: #{tpu_custom_call.1} parent=1 // pred_fallthru
      _
    // Predicated region
    $region22: #{tpu_custom_call.1} parent=1 // pred_check
      _
    $region23: #{tpu_custom_call.1} parent=1 // pred_check_branch
      %142 = sbr.rel (0) target = $region25
    $region24: #{tpu_custom_call.1} parent=1 // pred_region
      %144 = dma.done [#allocation4], 16
    $region25: #{tpu_custom_call.1} parent=1 // pred_fallthru
      _
    %145 = vsyncpa [#allocation3], 1
    %146 = vsyncpa [#allocation6], 1
    %147 = vsyncpa [#allocation4], 1

</llo_original>
